<compile_context>
chip_gen: v7x
topology: tpu7x:2x2x1
jax: 0.10.0
libtpu: 0.0.40
codegen_flags: <defaults>
</compile_context>

<pallas_src>
import jax
import jax.numpy as jnp
from jax.experimental import pallas as pl
from jax.experimental.pallas import tpu as pltpu


def _decoder_kernel(x_ref, w1_ref, b1_ref, w2_ref, b2_ref, out_ref):
    # hidden = tanh(x @ W1 + b1) -- kept as a value so Mosaic can stream it
    # straight into the second MXU push (no explicit VMEM round-trip).
    h = jnp.dot(x_ref[...], w1_ref[...], preferred_element_type=jnp.float32)
    ht = jnp.tanh(h + b1_ref[...])                  # b1 is (1, Hp), broadcasts
    # out = hidden @ W2 + b2 -- written at true width E (lane-masked stores,
    # but 4x less HBM write traffic than padding E to 128).
    out = jnp.dot(ht, w2_ref[...], preferred_element_type=jnp.float32)
    out_ref[...] = (out + b2_ref[...]).astype(out_ref.dtype)


def _round_up(n, m):
    return ((n + m - 1) // m) * m


def _pick_batch_tile(B, batch_tile):
    """Largest tb <= batch_tile that is a multiple of 8 and divides B.

    Prefers an even number of grid steps so a v7x two-TensorCore split leaves
    no core idle.  Returns None if no such tile exists (caller pads the tail).
    """
    start = (min(batch_tile, B) // 8) * 8
    best = None
    for tb in range(start, 0, -8):
        if B % tb == 0:
            if (B // tb) % 2 == 0:
                return tb
            if best is None:
                best = tb
    return best


def decoder_forward(x, w1, b1, w2, b2, *, batch_tile=2048):
    """x: [B, decoder_dim]; w1: [decoder_dim, hidden]; w2: [hidden, embed].

    Weights are stored pre-transposed ([in, out]) relative to PyTorch's
    nn.Linear weight layout so the kernel runs plain row-major MXU matmuls.
    """
    B, D = x.shape
    H = w1.shape[1]
    E = w2.shape[1]

    # Lane-dense hidden pad (exact); output keeps its true width E.
    Hp = max(_round_up(H, 128), 128)
    w1p = jnp.zeros((D, Hp), w1.dtype).at[:, :H].set(w1)
    b1p = jnp.zeros((1, Hp), b1.dtype).at[0, :H].set(b1.reshape(H))
    w2p = jnp.zeros((Hp, E), w2.dtype).at[:H, :].set(w2)
    b2p = b2.reshape(1, E)

    def cost(bp):
        return pl.CostEstimate(
            flops=2 * bp * (D * Hp + Hp * E),
            transcendentals=bp * Hp,                       # tanh
            bytes_accessed=4 * (bp * D + D * Hp + Hp + Hp * E + E + bp * E),
        )

    if B <= batch_tile:
        # Single step: full arrays as VMEM-resident blocks (full-array blocks
        # are exempt from the (8,128) rule), no pipeline bookkeeping, no
        # batch padding, no post-kernel slice.
        return pl.pallas_call(
            _decoder_kernel,
            out_shape=jax.ShapeDtypeStruct((B, E), x.dtype),
            in_specs=[pl.BlockSpec(memory_space=pltpu.MemorySpace.VMEM)] * 5,
            out_specs=pl.BlockSpec(memory_space=pltpu.MemorySpace.VMEM),
            cost_estimate=cost(B),
        )(x, w1p, b1p, w2p, b2p)

    # Batch-tiled path: big tiles amortise per-step overhead; x/out stream
    # through VMEM (double-buffered by Pallas), weights/biases stay resident
    # (index_map (0, 0)).  Footprint at tb=2048 is only a few MiB, so the
    # default scoped-VMEM limit is fine on v5e/v6e/v7x alike.
    tb = _pick_batch_tile(B, batch_tile)
    if tb is None:                        # awkward B: pad only the ragged tail
        tb = batch_tile
        Bp = _round_up(B, tb)
        xp = jnp.pad(x, ((0, Bp - B), (0, 0)))
    else:
        Bp = B
        xp = x
    nb = Bp // tb

    out_p = pl.pallas_call(
        _decoder_kernel,
        out_shape=jax.ShapeDtypeStruct((Bp, E), x.dtype),
        grid=(nb,),
        in_specs=[
            pl.BlockSpec((tb, D), lambda i: (i, 0)),
            pl.BlockSpec((D, Hp), lambda i: (0, 0)),
            pl.BlockSpec((1, Hp), lambda i: (0, 0)),
            pl.BlockSpec((Hp, E), lambda i: (0, 0)),
            pl.BlockSpec((1, E), lambda i: (0, 0)),
        ],
        out_specs=pl.BlockSpec((tb, E), lambda i: (i, 0)),
        compiler_params=pltpu.CompilerParams(
            # "parallel" lets the runtime shard batch tiles across TensorCores
            # on multi-TC parts; nb is kept even when possible so neither core
            # idles.
            # TODO(synk): on v7x-only builds, use pltpu.CORE_PARALLEL /
            # pl.core_map for an explicit 2-TC split.
            dimension_semantics=("parallel",),
        ),
        cost_estimate=cost(Bp),
    )(xp, w1p, b1p, w2p, b2p)

    return out_p if Bp == B else out_p[:B]


if __name__ == "__main__":
    # Small shapes consistent with the module: decoder_dim=32, hidden_dim=64,
    # embedding_dim=32, batch=8.
    decoder_dim, hidden_dim, embedding_dim = 32, 64, 32
    batch = 8

    key = jax.random.PRNGKey(0)
    kx, kw1, kb1, kw2, kb2, kx2 = jax.random.split(key, 6)

    x = jax.random.normal(kx, (batch, decoder_dim), dtype=jnp.float32)

    # Deterministic parameter init (uniform, nn.Linear-style bounds),
    # stored pre-transposed as [in, out].
    lim1 = 1.0 / (decoder_dim ** 0.5)
    w1 = jax.random.uniform(kw1, (decoder_dim, hidden_dim), jnp.float32, -lim1, lim1)
    b1 = jax.random.uniform(kb1, (hidden_dim,), jnp.float32, -lim1, lim1)
    lim2 = 1.0 / (hidden_dim ** 0.5)
    w2 = jax.random.uniform(kw2, (hidden_dim, embedding_dim), jnp.float32, -lim2, lim2)
    b2 = jax.random.uniform(kb2, (embedding_dim,), jnp.float32, -lim2, lim2)

    # --- Small batch: gridless (single-step, VMEM-resident) path. ------------
    out = decoder_forward(x, w1, b1, w2, b2)
    jax.block_until_ready(out)
    ref = jnp.tanh(x @ w1 + b1) @ w2 + b2
    assert out.shape == (batch, embedding_dim)
    assert jnp.allclose(out, ref, atol=1e-5, rtol=1e-5)

    # --- Large batch: exercises the batch-tiled "parallel" grid path
    #     (tb=2048, nb=4 even, no padded x copy, no post-kernel slice). -------
    big_batch = 8192
    xb = jax.random.normal(kx2, (big_batch, decoder_dim), dtype=jnp.float32)
    out_b = decoder_forward(xb, w1, b1, w2, b2, batch_tile=2048)
    jax.block_until_ready(out_b)
    ref_b = jnp.tanh(xb @ w1 + b1) @ w2 + b2
    assert out_b.shape == (big_batch, embedding_dim)
    assert jnp.allclose(out_b, ref_b, atol=1e-5, rtol=1e-5)

    print("KERNEL_OK")
</pallas_src>

<mosaic_0001>
module attributes {stable_mosaic.version = 11 : i64} {
  func.func @_decoder_kernel(%arg0: memref<8x32xf32, #tpu.memory_space<vmem>>, %arg1: memref<32x128xf32, #tpu.memory_space<vmem>>, %arg2: memref<1x128xf32, #tpu.memory_space<vmem>>, %arg3: memref<128x32xf32, #tpu.memory_space<vmem>>, %arg4: memref<1x32xf32, #tpu.memory_space<vmem>>, %arg5: memref<8x32xf32, #tpu.memory_space<vmem>>) attributes {dimension_semantics = [], scalar_prefetch = 0 : i64, scratch_operands = 0 : i64, tpu.core_type = #tpu.core_type<tc>} {
    %c0 = arith.constant 0 : index
    %c0_0 = arith.constant 0 : index
    %0 = vector.load %arg0[%c0, %c0_0] : memref<8x32xf32, #tpu.memory_space<vmem>>, vector<8x32xf32>
    %c0_1 = arith.constant 0 : index
    %c0_2 = arith.constant 0 : index
    %1 = vector.load %arg1[%c0_1, %c0_2] : memref<32x128xf32, #tpu.memory_space<vmem>>, vector<32x128xf32>
    %cst = arith.constant dense<0.000000e+00> : vector<8x128xf32>
    %2 = tpu.matmul %0, %1, %cst {dimension_numbers = #tpu.dot_dimension_numbers<[1], [0], [0], [1], [0, 0, 1, 1], [], []>} : vector<8x32xf32>, vector<32x128xf32>, vector<8x128xf32> -> vector<8x128xf32>
    %c0_3 = arith.constant 0 : index
    %c0_4 = arith.constant 0 : index
    %3 = vector.load %arg2[%c0_3, %c0_4] : memref<1x128xf32, #tpu.memory_space<vmem>>, vector<1x128xf32>
    %4 = vector.broadcast %3 : vector<1x128xf32> to vector<8x128xf32>
    %5 = arith.addf %2, %4 : vector<8x128xf32>
    %6 = math.tanh %5 : vector<8x128xf32>
    %c0_5 = arith.constant 0 : index
    %c0_6 = arith.constant 0 : index
    %7 = vector.load %arg3[%c0_5, %c0_6] : memref<128x32xf32, #tpu.memory_space<vmem>>, vector<128x32xf32>
    %cst_7 = arith.constant dense<0.000000e+00> : vector<8x32xf32>
    %8 = tpu.matmul %6, %7, %cst_7 {dimension_numbers = #tpu.dot_dimension_numbers<[1], [0], [0], [1], [0, 0, 1, 1], [], []>} : vector<8x128xf32>, vector<128x32xf32>, vector<8x32xf32> -> vector<8x32xf32>
    %c0_8 = arith.constant 0 : index
    %c0_9 = arith.constant 0 : index
    %9 = vector.load %arg4[%c0_8, %c0_9] : memref<1x32xf32, #tpu.memory_space<vmem>>, vector<1x32xf32>
    %10 = vector.broadcast %9 : vector<1x32xf32> to vector<8x32xf32>
    %11 = arith.addf %8, %10 : vector<8x32xf32>
    %c0_10 = arith.constant 0 : index
    %c0_11 = arith.constant 0 : index
    %12 = vector.load %arg5[%c0_10, %c0_11] : memref<8x32xf32, #tpu.memory_space<vmem>>, vector<8x32xf32>
    tpu.vector_store %arg5[%c0_10, %c0_11], %11 {strides = array<i32>} : memref<8x32xf32, #tpu.memory_space<vmem>>, vector<8x32xf32>,
    return
  }
}

</mosaic_0001>

<llo_original>
// kernel: tpu_custom_call.1
$region0: #{tpu_custom_call.1}
  #allocation0 [shape = 'u32[]', space=smem, size = 0x4, offset = 0x4, fixed_abs, tag = 'smem constant byte address 0x4 - core index']
  #allocation1 [shape = 'u32[144,128]{1,0:T(1,128)}', space=vmem, size = 0x12000, scoped, tag = 'internal scratch']
  %s0 = inlined_call_operand.vmem [shape: f32[8,32], index: 0, kind: input, shape index: {}]
  %s1 = inlined_call_operand.vmem [shape: f32[32,128], index: 1, kind: input, shape index: {}]
  %s2 = inlined_call_operand.vmem [shape: f32[1,128], index: 2, kind: input, shape index: {}]
  %s3 = inlined_call_operand.vmem [shape: f32[128,32], index: 3, kind: input, shape index: {}]
  %s4 = inlined_call_operand.vmem [shape: f32[1,32], index: 4, kind: input, shape index: {}]
  %s5 = inlined_call_operand.hbm [shape: f32[8,32], index: 5, kind: output, shape index: {}]
  %s6 = sld [smem:[#allocation0]]
  $region30: #{tpu_custom_call.1} parent=0
    _
  %s8 = ssub.s32 1, %s6
  %s9 = scalar_select 0, %s8, %s6
  $region1: #{tpu_custom_call.1} parent=0
    #allocation2 [shape = 'u8[4096]{0}', space=vmem, size = 0x1000, scoped, tag = 'output window, operand 0, single buffered']
    #allocation3 [shape = 's32[1]{0}', space=sflag, size = 0x4, scoped, tag = 'scoped memory for tpu_custom_call.1']
    %10 = vsyncpa [#allocation3], 0
    // Predicated region
    $region2: #{tpu_custom_call.1} parent=1 // pred_check
      _
    $region3: #{tpu_custom_call.1} parent=1 // pred_check_branch
      %12 = sbr.rel (0) target = $region5
    $region4: #{tpu_custom_call.1} parent=1 // pred_region
      _
    $region5: #{tpu_custom_call.1} parent=1 // pred_fallthru
      _
    // Predicated region
    $region6: #{tpu_custom_call.1} parent=1 // pred_check
      _
    $region7: #{tpu_custom_call.1} parent=1 // pred_check_branch
      %14 = sbr.rel (0) target = $region9
    $region8: #{tpu_custom_call.1} parent=1 // pred_region
      _
    $region9: #{tpu_custom_call.1} parent=1 // pred_fallthru
      _
    // Predicated region
    $region10: #{tpu_custom_call.1} parent=1 // pred_check
      _
    $region11: #{tpu_custom_call.1} parent=1 // pred_check_branch
      %16 = sbr.rel (0) target = $region13
    $region12: #{tpu_custom_call.1} parent=1 // pred_region
      _
    $region13: #{tpu_custom_call.1} parent=1 // pred_fallthru
      _
    // Predicated region
    $region14: #{tpu_custom_call.1} parent=1 // pred_check
      _
    $region15: #{tpu_custom_call.1} parent=1 // pred_check_branch
      %18 = sbr.rel (0) target = $region17
    $region16: #{tpu_custom_call.1} parent=1 // pred_region
      _
    $region17: #{tpu_custom_call.1} parent=1 // pred_fallthru
      _
    // Predicated region
    $region18: #{tpu_custom_call.1} parent=1 // pred_check
      _
    $region19: #{tpu_custom_call.1} parent=1 // pred_check_branch
      %20 = sbr.rel (0) target = $region21
    $region20: #{tpu_custom_call.1} parent=1 // pred_region
      _
    $region21: #{tpu_custom_call.1} parent=1 // pred_fallthru
      _
    %v21 = vld [vmem:[%s0] sm:$0xff]
    %v22 = vld [vmem:[%s1] sm:$0xff]
    %v23 = vld [vmem:[%s1 + $0x8] sm:$0xff]
    %v24 = vld [vmem:[%s1 + $0x10] sm:$0xff]
    %v25 = vld [vmem:[%s1 + $0x18] sm:$0xff]
    %v26 = vld [vmem:[%s2] sm:$0x1]
    %v28 = vlaneseq
    %v29 = vshrl.u32 %v28, 7
    %v30 = vsub.s32 0, %v29
    %v31 = vrot.slane %v26, %v30
    %vm33 = vcmask 261120
    %v35 = vsel %vm33, %v21, 0
    %37 = vmatprep.subr.mxu0 0.0
    %38 = vmatpush1.msra.mxu0 %v22
    %39 = vmatprep.subr.mxu0 0.0
    %40 = vmatpush1.msra.mxu0 %v23
    %41 = vmatprep.subr.mxu0 0.0
    %42 = vmatpush1.msra.mxu0 %v24
    %43 = vmatprep.subr.mxu0 0.0
    %44 = vmatpush1.msra.mxu0 %v25
    %45 = vmatprep.subr.mxu0 0.0
    %46 = vmatpush1.msra.mxu0 0.0
    %47 = vmatprep.subr.mxu0 0.0
    %48 = vmatpush1.msra.mxu0 0.0
    %49 = vmatprep.subr.mxu0 0.0
    %50 = vmatpush1.msra.mxu0 0.0
    %51 = vmatprep.subr.mxu0 0.0
    %52 = vmatpush1.msra.mxu0 0.0
    %53 = vmatprep.subr.mxu0 0.0
    %54 = vmatpush1.msra.mxu0 0.0
    %55 = vmatprep.subr.mxu0 0.0
    %56 = vmatpush1.msra.mxu0 0.0
    %57 = vmatprep.subr.mxu0 0.0
    %58 = vmatpush1.msra.mxu0 0.0
    %59 = vmatprep.subr.mxu0 0.0
    %60 = vmatpush1.msra.mxu0 0.0
    %61 = vmatprep.subr.mxu0 0.0
    %62 = vmatpush1.msra.mxu0 0.0
    %63 = vmatprep.subr.mxu0 0.0
    %64 = vmatpush1.msra.mxu0 0.0
    %65 = vmatprep.subr.mxu0 0.0
    %66 = vmatpush1.msra.mxu0 0.0
    %67 = vmatprep.subr.mxu0 0.0
    %68 = vmatpush1.msra.mxu0 0.0
    %69 = vmatprep.subr.mxu0 0.0
    %70 = vmatpush1.msra.mxu0 0.0
    %71 = vmatprep.subr.mxu0 0.0
    %72 = vmatpush1.msra.mxu0 0.0
    %73 = vmatprep.subr.mxu0 0.0
    %74 = vmatpush1.msra.mxu0 0.0
    %75 = vmatprep.subr.mxu0 0.0
    %76 = vmatpush1.msra.mxu0 0.0
    %77 = vmatprep.subr.mxu0 0.0
    %78 = vmatpush1.msra.mxu0 0.0
    %79 = vmatprep.subr.mxu0 0.0
    %80 = vmatpush1.msra.mxu0 0.0
    %81 = vmatprep.subr.mxu0 0.0
    %82 = vmatpush1.msra.mxu0 0.0
    %83 = vmatprep.subr.mxu0 0.0
    %84 = vmatpush1.msra.mxu0 0.0
    %85 = vmatprep.subr.mxu0 0.0
    %86 = vmatpush1.msra.mxu0 0.0
    %87 = vmatprep.subr.mxu0 0.0
    %88 = vmatpush1.msra.mxu0 0.0
    %89 = vmatprep.subr.mxu0 0.0
    %90 = vmatpush1.msra.mxu0 0.0
    %91 = vmatprep.subr.mxu0 0.0
    %92 = vmatpush1.msra.mxu0 0.0
    %93 = vmatprep.subr.mxu0 0.0
    %94 = vmatpush1.msra.mxu0 0.0
    %95 = vmatprep.subr.mxu0 0.0
    %96 = vmatpush1.msra.mxu0 0.0
    %97 = vmatprep.subr.mxu0 0.0
    %98 = vmatpush1.msra.mxu0 0.0
    %99 = vmatprep.subr.mxu0 0.0
    %100 = vmatpush1.msra.mxu0 0.0
    %101 = vmatprep.mubr.f32.mxu0 0.0
    %102 = vmatmul.mubr.f32.gmra.mrb[0].mxu0 %v35
    %v103 = vpop.f32.mrb[0].mxu0
    %v104 = vadd.f32 %v31, %v103
    %v105 = vpop.f32.mrb[0].mxu0
    %106 = vdwg.mxu0
    %v107 = vtanh.pop %v104
    %v108 = vld [vmem:[%s3] sm:$0xff]
    %v109 = vld [vmem:[%s3 + $0x8] sm:$0xff]
    %v110 = vld [vmem:[%s3 + $0x10] sm:$0xff]
    %v111 = vld [vmem:[%s3 + $0x18] sm:$0xff]
    %v112 = vld [vmem:[%s3 + $0x20] sm:$0xff]
    %v113 = vld [vmem:[%s3 + $0x28] sm:$0xff]
    %v114 = vld [vmem:[%s3 + $0x30] sm:$0xff]
    %v115 = vld [vmem:[%s3 + $0x38] sm:$0xff]
    %v116 = vld [vmem:[%s3 + $0x40] sm:$0xff]
    %v117 = vld [vmem:[%s3 + $0x48] sm:$0xff]
    %v118 = vld [vmem:[%s3 + $0x50] sm:$0xff]
    %v119 = vld [vmem:[%s3 + $0x58] sm:$0xff]
    %v120 = vld [vmem:[%s3 + $0x60] sm:$0xff]
    %v121 = vld [vmem:[%s3 + $0x68] sm:$0xff]
    %v122 = vld [vmem:[%s3 + $0x70] sm:$0xff]
    %v123 = vld [vmem:[%s3 + $0x78] sm:$0xff]
    %v124 = vld [vmem:[%s4] sm:$0x1]
    %v126 = vlaneseq
    %v127 = vshrl.u32 %v126, 7
    %v128 = vsub.s32 0, %v127
    %v129 = vrot.slane %v124, %v128
    %131 = vmatprep.subr.mxu0 0.0
    %132 = vmatpush1.msra.mxu0 %v108
    %133 = vmatprep.subr.mxu0 0.0
    %134 = vmatpush1.msra.mxu0 %v109
    %135 = vmatprep.subr.mxu0 0.0
    %136 = vmatpush1.msra.mxu0 %v110
    %137 = vmatprep.subr.mxu0 0.0
    %138 = vmatpush1.msra.mxu0 %v111
    %139 = vmatprep.subr.mxu0 0.0
    %140 = vmatpush1.msra.mxu0 %v112
    %141 = vmatprep.subr.mxu0 0.0
    %142 = vmatpush1.msra.mxu0 %v113
    %143 = vmatprep.subr.mxu0 0.0
    %144 = vmatpush1.msra.mxu0 %v114
    %145 = vmatprep.subr.mxu0 0.0
    %146 = vmatpush1.msra.mxu0 %v115
    %147 = vmatprep.subr.mxu0 0.0
    %148 = vmatpush1.msra.mxu0 %v116
    %149 = vmatprep.subr.mxu0 0.0
    %150 = vmatpush1.msra.mxu0 %v117
    %151 = vmatprep.subr.mxu0 0.0
    %152 = vmatpush1.msra.mxu0 %v118
    %153 = vmatprep.subr.mxu0 0.0
    %154 = vmatpush1.msra.mxu0 %v119
    %155 = vmatprep.subr.mxu0 0.0
    %156 = vmatpush1.msra.mxu0 %v120
    %157 = vmatprep.subr.mxu0 0.0
    %158 = vmatpush1.msra.mxu0 %v121
    %159 = vmatprep.subr.mxu0 0.0
    %160 = vmatpush1.msra.mxu0 %v122
    %161 = vmatprep.subr.mxu0 0.0
    %162 = vmatpush1.msra.mxu0 %v123
    %163 = vmatprep.subr.mxu0 0.0
    %164 = vmatpush1.msra.mxu0 0.0
    %165 = vmatprep.subr.mxu0 0.0
    %166 = vmatpush1.msra.mxu0 0.0
    %167 = vmatprep.subr.mxu0 0.0
    %168 = vmatpush1.msra.mxu0 0.0
    %169 = vmatprep.subr.mxu0 0.0
    %170 = vmatpush1.msra.mxu0 0.0
    %171 = vmatprep.subr.mxu0 0.0
    %172 = vmatpush1.msra.mxu0 0.0
    %173 = vmatprep.subr.mxu0 0.0
    %174 = vmatpush1.msra.mxu0 0.0
    %175 = vmatprep.subr.mxu0 0.0
    %176 = vmatpush1.msra.mxu0 0.0
    %177 = vmatprep.subr.mxu0 0.0
    %178 = vmatpush1.msra.mxu0 0.0
    %179 = vmatprep.subr.mxu0 0.0
    %180 = vmatpush1.msra.mxu0 0.0
    %181 = vmatprep.subr.mxu0 0.0
    %182 = vmatpush1.msra.mxu0 0.0
    %183 = vmatprep.subr.mxu0 0.0
    %184 = vmatpush1.msra.mxu0 0.0
    %185 = vmatprep.subr.mxu0 0.0
    %186 = vmatpush1.msra.mxu0 0.0
    %187 = vmatprep.subr.mxu0 0.0
    %188 = vmatpush1.msra.mxu0 0.0
    %189 = vmatprep.subr.mxu0 0.0
    %190 = vmatpush1.msra.mxu0 0.0
    %191 = vmatprep.subr.mxu0 0.0
    %192 = vmatpush1.msra.mxu0 0.0
    %193 = vmatprep.subr.mxu0 0.0
    %194 = vmatpush1.msra.mxu0 0.0
    %195 = vmatprep.mubr.f32.mxu0 0.0
    %196 = vmatmul.mubr.f32.gmra.mrb[0].mxu0 %v107
    %v197 = vpop.f32.mrb[0].mxu0
    %v198 = vadd.f32 %v129, %v197
    %v199 = vpop.f32.mrb[0].mxu0
    %200 = vdwg.mxu0
    %201 = vst.msk [vmem:[#allocation2] sm:$0xff] %vm33, %v198
    // Predicated region
    $region22: #{tpu_custom_call.1} parent=1 // pred_check
      _
    $region23: #{tpu_custom_call.1} parent=1 // pred_check_branch
      %203 = sbr.rel (0) target = $region25
    $region24: #{tpu_custom_call.1} parent=1 // pred_region
      %s205 = ssub.s32 128, 128
      %206 = vsyncadd [#allocation3], %s205
      %s208 = sshll.u32 [#allocation2], 4
      %s209 = int_to_ptr.vmem [resolvable:$true] %s208
      %211 = dma.vmem_to_hbm [thread:$0]  %s209, 128, %s5, [#allocation3]
    $region25: #{tpu_custom_call.1} parent=1 // pred_fallthru
      _
    // Predicated region
    $region26: #{tpu_custom_call.1} parent=1 // pred_check
      _
    $region27: #{tpu_custom_call.1} parent=1 // pred_check_branch
      %213 = sbr.rel (0) target = $region29
    $region28: #{tpu_custom_call.1} parent=1 // pred_region
      %214 = dma.done [#allocation3], 128
    $region29: #{tpu_custom_call.1} parent=1 // pred_fallthru
      _
    %215 = vsyncpa [#allocation3], 1

</llo_original>
